<compile_context>
chip_gen: v7x
topology: tpu7x:2x2x1
jax: 0.10.0
libtpu: 0.0.40
codegen_flags: <defaults>
</compile_context>

<pallas_src>
import functools
import math

import jax
import jax.numpy as jnp
from jax import lax
from jax.experimental import pallas as pl
from jax.experimental.pallas import tpu as pltpu


@functools.lru_cache(maxsize=None)
def _vmem_limit_bytes():
    """Generation-aware VMEM budget: ~3/4 of physical VMEM, capped for safety
    (v5e/v6e 128 MiB -> 96 MiB, v7x 64 MiB -> 48 MiB)."""
    try:
        cap = int(pltpu.get_tpu_info().vmem_capacity_bytes)
    except Exception:  # query unavailable -> conservative fallback
        cap = 64 * 1024 * 1024
    return int(min(max(cap * 3 // 4, 32 * 1024 * 1024), 96 * 1024 * 1024))


def _pick_tile(dim, desired, align):
    """Largest multiple of `align` that divides `dim` and is <= `desired`;
    falls back to the full dimension (always a legal block shape)."""
    if dim <= desired:
        return dim
    t = (desired // align) * align
    while t >= align:
        if dim % t == 0:
            return t
        t -= align
    return dim


# --------------------- tiled linear: y = x @ w + b -------------------------
def _linear_kernel(x_ref, w_ref, b_ref, o_ref, acc_ref):
    kk = pl.program_id(2)

    @pl.when(kk == 0)
    def _():
        acc_ref[...] = jnp.zeros(acc_ref.shape, acc_ref.dtype)

    acc_ref[...] += jnp.dot(
        x_ref[...].astype(jnp.bfloat16),   # no-op when x is already bf16
        w_ref[...],                        # weights pre-cast to bf16
        preferred_element_type=jnp.float32,
    )

    @pl.when(kk == pl.num_programs(2) - 1)
    def _():
        o_ref[...] = (acc_ref[...] + b_ref[...]).astype(o_ref.dtype)


def linear(x, w, b, *, tm=512, tn=512, tk=1024, out_dtype=jnp.float32):
    """x: [M, K]; w: [K, N] bf16 (pre-transposed from torch [N, K]); b: [N] f32."""
    M, K = x.shape
    N = w.shape[1]
    tm = _pick_tile(M, tm, 8)
    tn = _pick_tile(N, tn, 128)
    tk = _pick_tile(K, tk, 128)
    grid = (M // tm, N // tn, K // tk)
    bytes_accessed = (x.dtype.itemsize * M * K * (N // tn)      # x panel re-reads
                      + w.dtype.itemsize * K * N * (M // tm)    # w panel re-reads
                      + jnp.dtype(out_dtype).itemsize * M * N)  # output write
    return pl.pallas_call(
        _linear_kernel,
        out_shape=jax.ShapeDtypeStruct((M, N), out_dtype),
        grid_spec=pltpu.PrefetchScalarGridSpec(
            num_scalar_prefetch=0,
            grid=grid,
            in_specs=[
                pl.BlockSpec((tm, tk), lambda i, j, k: (i, k)),
                pl.BlockSpec((tk, tn), lambda i, j, k: (k, j)),
                pl.BlockSpec((1, tn), lambda i, j, k: (0, j)),
            ],
            out_specs=pl.BlockSpec((tm, tn), lambda i, j, k: (i, j)),
            scratch_shapes=[pltpu.VMEM((tm, tn), jnp.float32)],
        ),
        compiler_params=pltpu.CompilerParams(
            dimension_semantics=("parallel", "parallel", "arbitrary"),
            vmem_limit_bytes=_vmem_limit_bytes(),
        ),
        cost_estimate=pl.CostEstimate(
            flops=2 * M * N * K,
            transcendentals=0,
            bytes_accessed=int(bytes_accessed),
        ),
    )(x, w, b.reshape(1, N))


# ------- fused head split + GPT-NeoX rotary + scale + bf16 cast ------------
def _rope_split_kernel(qkv_ref, sin_ref, cos_ref, q_ref, k_ref, v_ref,
                       *, rot, hs, q_scale):
    x = qkv_ref[0]                      # [tb, H, 3*hs] bf16
    half = rot // 2
    sin = sin_ref[...]                  # [tb, rot] f32
    cos = cos_ref[...]
    c1 = cos[:, None, :half]            # [tb, 1, half] -> broadcast over heads
    c2 = cos[:, None, half:]
    s1 = sin[:, None, :half]
    s2 = sin[:, None, half:]

    def rope_store(t, out_ref, scale):
        # GPT-NeoX rotary written as two half-width slice stores (no concat,
        # no cross-lane shuffles); math in f32, stored as bf16.
        t = t.astype(jnp.float32)
        x1 = t[..., :half]
        x2 = t[..., half:rot]
        out_ref[0, :, :, :half] = ((x1 * c1 - x2 * s1) * scale).astype(out_ref.dtype)
        out_ref[0, :, :, half:rot] = ((x2 * c2 + x1 * s2) * scale).astype(out_ref.dtype)
        if rot < hs:                     # non-rotary pass-through tail
            out_ref[0, :, :, rot:] = (t[..., rot:] * scale).astype(out_ref.dtype)

    rope_store(x[..., 0:hs], q_ref, q_scale)        # 1/sqrt(hs) folded into q
    rope_store(x[..., hs:2 * hs], k_ref, 1.0)
    v_ref[0] = x[..., 2 * hs:3 * hs].astype(v_ref.dtype)


def rope_split_cast(qkv, sin, cos, rot, q_scale, *, t_blk=256):
    """qkv: [B, T, H, 3*hs] bf16 -> (q, k, v): [B, T, H, hs] bf16 with rotary
    applied to q/k and 1/sqrt(hs) folded into q."""
    B, T, H, three_hs = qkv.shape
    hs = three_hs // 3
    tb = _pick_tile(T, t_blk, 8)
    grid = (B, T // tb)
    out_sds = jax.ShapeDtypeStruct((B, T, H, hs), jnp.bfloat16)
    out_spec = pl.BlockSpec((1, tb, H, hs), lambda b, t: (b, t, 0, 0))
    kernel = functools.partial(_rope_split_kernel, rot=rot, hs=hs, q_scale=q_scale)
    return pl.pallas_call(
        kernel,
        out_shape=(out_sds, out_sds, out_sds),
        grid_spec=pltpu.PrefetchScalarGridSpec(
            num_scalar_prefetch=0,
            grid=grid,
            in_specs=[
                pl.BlockSpec((1, tb, H, three_hs), lambda b, t: (b, t, 0, 0)),
                pl.BlockSpec((tb, rot), lambda b, t: (t, 0)),
                pl.BlockSpec((tb, rot), lambda b, t: (t, 0)),
            ],
            out_specs=(out_spec, out_spec, out_spec),
        ),
        compiler_params=pltpu.CompilerParams(
            dimension_semantics=("parallel", "parallel"),
            vmem_limit_bytes=_vmem_limit_bytes(),
        ),
    )(qkv, sin, cos)


# ------------------ flash-style causal attention ---------------------------
def _flash_attn_kernel(q_ref, k_ref, v_ref, o_ref, m_sc, l_sc, acc_sc):
    qb = pl.program_id(1)
    kv = pl.program_id(2)
    H = q_ref.shape[1]
    tq = q_ref.shape[2]
    tk = k_ref.shape[2]
    hs = q_ref.shape[3]

    @pl.when(kv == 0)
    def _():
        m_sc[...] = jnp.full(m_sc.shape, -jnp.inf, m_sc.dtype)
        l_sc[...] = jnp.zeros(l_sc.shape, l_sc.dtype)
        acc_sc[...] = jnp.zeros(acc_sc.shape, acc_sc.dtype)

    # Skip fully-masked (strictly upper-triangular) kv blocks entirely.
    @pl.when(kv * tk <= qb * tq + (tq - 1))
    def _():
        q = q_ref[0]                          # [H, tq, hs] bf16 (pre-scaled)
        k = k_ref[0]                          # [H, tk, hs] bf16
        v = v_ref[0]                          # [H, tk, hs] bf16
        s = jnp.einsum("hqd,hkd->hqk", q, k,
                       preferred_element_type=jnp.float32)   # [H, tq, tk] f32

        def update(scores):
            m_prev = m_sc[...]
            m_new = jnp.maximum(m_prev, jnp.max(scores, axis=-1, keepdims=True))
            alpha = jnp.exp(m_prev - m_new)
            p = jnp.exp(scores - m_new)
            l_sc[...] = alpha * l_sc[...] + jnp.sum(p, axis=-1, keepdims=True)
            acc_sc[...] = alpha * acc_sc[...] + jnp.einsum(
                "hqk,hkd->hqd", p.astype(jnp.bfloat16), v,
                preferred_element_type=jnp.float32)
            m_sc[...] = m_new

        # Only blocks straddling the causal boundary build/apply the mask;
        # strictly-below-diagonal blocks skip the iota/compare/select (VPU win).
        needs_mask = kv * tk + (tk - 1) > qb * tq

        @pl.when(needs_mask)
        def _():
            row = qb * tq + lax.broadcasted_iota(jnp.int32, (tq, tk), 0)
            col = kv * tk + lax.broadcasted_iota(jnp.int32, (tq, tk), 1)
            # -1e30 (not -inf) keeps exp() NaN-free; scores stay f32 here.
            update(jnp.where((col <= row)[None], s, -1e30))

        @pl.when(jnp.logical_not(needs_mask))
        def _():
            update(s)

    @pl.when(kv == pl.num_programs(2) - 1)
    def _():
        inv_l = pl.reciprocal(l_sc[...], approx=True)   # [H, tq, 1]
        acc = acc_sc[...]                               # [H, tq, hs] f32
        # Per-head static-slice stores into the lane-dense [tq, C] slab
        # (no H*tq*C concat temporary -> no epilogue vreg spills).
        for h in range(H):
            o_ref[0, :, h * hs:(h + 1) * hs] = (acc[h] * inv_l[h]).astype(o_ref.dtype)


def flash_attention(q, k, v, *, t_blk=256):
    """q, k, v: [B, H, T, hs] bf16 (q pre-scaled, rotary already applied).
    Returns [B, T, C] bf16 written directly in merged-head layout."""
    B, H, T, hs = q.shape
    C = H * hs
    tq = _pick_tile(T, t_blk, 8)
    tk = tq  # equal tiles keep block-skip / clamp logic exact
    nq, nk = T // tq, T // tk
    grid = (B, nq, nk)

    def kv_map(b, i, j):
        # Clamp: fully-masked kv blocks reuse the previous block index, so
        # their HBM->VMEM DMAs are elided.
        j_max = (i * tq + (tq - 1)) // tk
        return (b, 0, jnp.minimum(j, j_max), 0)

    kv_tiles = B * (nq * (nq + 1) // 2)    # lower-triangular blocks actually visited
    bytes_accessed = (q.dtype.itemsize * B * H * T * hs                 # q (read once)
                      + 2 * k.dtype.itemsize * kv_tiles * H * tk * hs   # k+v re-reads
                      + 2 * B * T * C)                                  # bf16 output
    return pl.pallas_call(
        _flash_attn_kernel,
        out_shape=jax.ShapeDtypeStruct((B, T, C), jnp.bfloat16),
        grid_spec=pltpu.PrefetchScalarGridSpec(
            num_scalar_prefetch=0,
            grid=grid,
            in_specs=[
                pl.BlockSpec((1, H, tq, hs), lambda b, i, j: (b, 0, i, 0)),
                pl.BlockSpec((1, H, tk, hs), kv_map),
                pl.BlockSpec((1, H, tk, hs), kv_map),
            ],
            out_specs=pl.BlockSpec((1, tq, C), lambda b, i, j: (b, i, 0)),
            scratch_shapes=[
                pltpu.VMEM((H, tq, 1), jnp.float32),    # running max m
                pltpu.VMEM((H, tq, 1), jnp.float32),    # running sum l
                pltpu.VMEM((H, tq, hs), jnp.float32),   # output accumulator
            ],
        ),
        compiler_params=pltpu.CompilerParams(
            # batch axis leading & parallel -> balanced split across v7x's 2 TCs
            dimension_semantics=("parallel", "parallel", "arbitrary"),
            vmem_limit_bytes=_vmem_limit_bytes(),
        ),
        cost_estimate=pl.CostEstimate(
            flops=4 * kv_tiles * H * tq * tk * hs,
            transcendentals=kv_tiles * H * tq * tk,
            bytes_accessed=int(bytes_accessed),
        ),
    )(q, k, v)


# --------------------------- full forward pass -----------------------------
def prepare_params(w_attn, b_attn, w_proj, b_proj):
    """One-time parameter prep (do at load time, NOT per forward): transpose
    torch [out, in] -> [in, out] and pre-cast weights to bf16 so the GEMM
    weight DMA stream is half-width and no per-call w.T HBM copy exists."""
    return (jnp.asarray(w_attn.T, jnp.bfloat16),
            jnp.asarray(b_attn, jnp.float32),
            jnp.asarray(w_proj.T, jnp.bfloat16),
            jnp.asarray(b_proj, jnp.float32))


def causal_self_attention(x, sin, cos, prepared_params, n_head, rotary_ndims):
    B, T, C = x.shape
    H = n_head
    hs = C // H
    w_attn_t, b_attn, w_proj_t, b_proj = prepared_params

    # 1) fused QKV projection -> bf16 output (halves qkv HBM bytes).
    qkv = linear(x.reshape(B * T, C), w_attn_t, b_attn, out_dtype=jnp.bfloat16)

    # 2+3) head split + GPT-NeoX rotary + 1/sqrt(hs) scaling + bf16, fused in
    #      one VMEM-resident kernel (rope hoisted out of the attention kv loop,
    #      no XLA slice round trips).
    q, k, v = rope_split_cast(qkv.reshape(B, T, H, 3 * hs), sin, cos,
                              rotary_ndims, 1.0 / math.sqrt(hs))

    # [B, T, H, hs] -> [B, H, T, hs] on bf16 (half the bytes of the old f32 path).
    # TODO(synk): fold this transpose into head-grouped projection/rope output
    # BlockSpecs to drop the HBM round trip; needs hs % 128 == 0 to stay legal.
    q = q.transpose(0, 2, 1, 3)
    k = k.transpose(0, 2, 1, 3)
    v = v.transpose(0, 2, 1, 3)

    # 4) flash-style causal attention; bf16 output already in [B, T, C] layout.
    y = flash_attention(q, k, v)

    # 5) output projection (resid_dropout is identity, p=0); final output f32.
    out = linear(y.reshape(B * T, C), w_proj_t, b_proj, out_dtype=jnp.float32)
    return out.reshape(B, T, C)


# ---------------- pure-JAX reference (for a sanity check) ------------------
def reference(x, sin, cos, params, n_head, rotary_ndims):
    B, T, C = x.shape
    hs = C // n_head
    w_attn, b_attn, w_proj, b_proj = params
    qkv = x @ w_attn.T + b_attn
    qkv = qkv.reshape(B, T, n_head, 3 * hs)
    q, k, v = qkv[..., :hs], qkv[..., hs:2 * hs], qkv[..., 2 * hs:]
    q = q.transpose(0, 2, 1, 3)
    k = k.transpose(0, 2, 1, 3)
    v = v.transpose(0, 2, 1, 3)

    def rope(t):
        tr, tp = t[..., :rotary_ndims], t[..., rotary_ndims:]
        x1, x2 = tr[..., : rotary_ndims // 2], tr[..., rotary_ndims // 2:]
        rotated = jnp.concatenate([-x2, x1], axis=-1)
        return jnp.concatenate([tr * cos + rotated * sin, tp], axis=-1)

    q, k = rope(q), rope(k)
    att = (q @ jnp.swapaxes(k, -1, -2)) / math.sqrt(hs)
    mask = jnp.tril(jnp.ones((T, T), dtype=bool))
    att = jnp.where(mask, att, -jnp.inf)
    att = jax.nn.softmax(att, axis=-1)
    y = (att @ v).transpose(0, 2, 1, 3).reshape(B, T, C)
    return y @ w_proj.T + b_proj


if __name__ == "__main__":
    # small config consistent with the module: n_embd=32, n_head=4, rotary_pct=0.5
    B, T, C, n_head = 2, 8, 32, 4
    hs = C // n_head
    rotary_pct = 0.5
    rotary_ndims = int(hs * rotary_pct)  # 4

    key = jax.random.PRNGKey(0)
    k1, k2, k3, k4, k5 = jax.random.split(key, 5)
    x = jax.random.normal(k1, (B, T, C), jnp.float32)
    # deterministic synthetic parameters (torch Linear layout: weight [out, in])
    w_attn = jax.random.normal(k2, (3 * C, C), jnp.float32) * 0.02
    b_attn = jax.random.normal(k3, (3 * C,), jnp.float32) * 0.02
    w_proj = jax.random.normal(k4, (C, C), jnp.float32) * 0.02
    b_proj = jax.random.normal(k5, (C,), jnp.float32) * 0.02
    params = (w_attn, b_attn, w_proj, b_proj)
    prepared = prepare_params(*params)   # one-time weight transpose + bf16 cast

    # GPT-NeoX rotary tables, shape [T, rotary_ndims]
    inv_freq = 1.0 / (
        10000.0 ** (jnp.arange(0, rotary_ndims, 2, dtype=jnp.float32) / rotary_ndims)
    )
    pos = jnp.arange(T, dtype=jnp.float32)
    freqs = pos[:, None] * inv_freq[None, :]
    emb = jnp.concatenate([freqs, freqs], axis=-1)
    sin, cos = jnp.sin(emb), jnp.cos(emb)

    y = causal_self_attention(x, sin, cos, prepared, n_head, rotary_ndims)
    y = jax.block_until_ready(y)

    y_ref = reference(x, sin, cos, params, n_head, rotary_ndims)
    assert y.shape == (B, T, C)
    assert bool(jnp.allclose(y, y_ref, atol=1e-2, rtol=5e-2)), "mismatch vs reference"
    print("KERNEL_OK")
</pallas_src>

<mosaic_0001>
module attributes {stable_mosaic.version = 11 : i64} {
  func.func @_linear_kernel(%arg0: i32, %arg1: i32, %arg2: i32, %arg3: memref<16x32xf32, #tpu.memory_space<vmem>>, %arg4: memref<32x96xbf16, #tpu.memory_space<vmem>>, %arg5: memref<1x96xf32, #tpu.memory_space<vmem>>, %arg6: memref<16x96xbf16, #tpu.memory_space<vmem>>, %arg7: memref<16x96xf32, #tpu.memory_space<vmem>>) attributes {dimension_semantics = [#tpu.dimension_semantics<parallel>, #tpu.dimension_semantics<parallel>, #tpu.dimension_semantics<arbitrary>], iteration_bounds = array<i64: 1, 1, 1>, scalar_prefetch = 0 : i64, scratch_operands = 1 : i64, tpu.core_type = #tpu.core_type<tc>, window_params = [{transform_indices = @transform_0, window_bounds = array<i64: 16, 32>}, {transform_indices = @transform_1, window_bounds = array<i64: 32, 96>}, {transform_indices = @transform_2, window_bounds = array<i64: 1, 96>}, {transform_indices = @transform_3, window_bounds = array<i64: 16, 96>}]} {
    %c0_i32 = arith.constant 0 : i32
    %0 = arith.cmpi eq, %arg2, %c0_i32 : i32
    %1 = arith.extui %0 : i1 to i32
    %c0_i32_0 = arith.constant 0 : i32
    %2 = arith.cmpi ne, %1, %c0_i32_0 : i32
    scf.if %2 {
      %cst_10 = arith.constant 0.000000e+00 : f32
      %13 = vector.broadcast %cst_10 : f32 to vector<16x96xf32>
      %c0_11 = arith.constant 0 : index
      %c0_12 = arith.constant 0 : index
      %14 = vector.load %arg7[%c0_11, %c0_12] : memref<16x96xf32, #tpu.memory_space<vmem>>, vector<16x96xf32>
      tpu.vector_store %arg7[%c0_11, %c0_12], %13 {strides = array<i32>} : memref<16x96xf32, #tpu.memory_space<vmem>>, vector<16x96xf32>,
    } else {
    }
    %c0 = arith.constant 0 : index
    %c0_1 = arith.constant 0 : index
    %3 = vector.load %arg7[%c0, %c0_1] : memref<16x96xf32, #tpu.memory_space<vmem>>, vector<16x96xf32>
    %c0_2 = arith.constant 0 : index
    %c0_3 = arith.constant 0 : index
    %4 = vector.load %arg3[%c0_2, %c0_3] : memref<16x32xf32, #tpu.memory_space<vmem>>, vector<16x32xf32>
    %5 = arith.truncf %4 : vector<16x32xf32> to vector<16x32xbf16>
    %c0_4 = arith.constant 0 : index
    %c0_5 = arith.constant 0 : index
    %6 = vector.load %arg4[%c0_4, %c0_5] : memref<32x96xbf16, #tpu.memory_space<vmem>>, vector<32x96xbf16>
    %cst = arith.constant dense<0.000000e+00> : vector<16x96xf32>
    %7 = tpu.matmul %5, %6, %cst {dimension_numbers = #tpu.dot_dimension_numbers<[1], [0], [0], [1], [0, 0, 1, 1], [], []>} : vector<16x32xbf16>, vector<32x96xbf16>, vector<16x96xf32> -> vector<16x96xf32>
    %8 = arith.addf %3, %7 : vector<16x96xf32>
    %c0_6 = arith.constant 0 : index
    %c0_7 = arith.constant 0 : index
    %9 = vector.load %arg7[%c0_6, %c0_7] : memref<16x96xf32, #tpu.memory_space<vmem>>, vector<16x96xf32>
    tpu.vector_store %arg7[%c0_6, %c0_7], %8 {strides = array<i32>} : memref<16x96xf32, #tpu.memory_space<vmem>>, vector<16x96xf32>,
    %c0_i32_8 = arith.constant 0 : i32
    %10 = arith.cmpi eq, %arg2, %c0_i32_8 : i32
    %11 = arith.extui %10 : i1 to i32
    %c0_i32_9 = arith.constant 0 : i32
    %12 = arith.cmpi ne, %11, %c0_i32_9 : i32
    scf.if %12 {
      %c0_10 = arith.constant 0 : index
      %c0_11 = arith.constant 0 : index
      %13 = vector.load %arg7[%c0_10, %c0_11] : memref<16x96xf32, #tpu.memory_space<vmem>>, vector<16x96xf32>
      %c0_12 = arith.constant 0 : index
      %c0_13 = arith.constant 0 : index
      %14 = vector.load %arg5[%c0_12, %c0_13] : memref<1x96xf32, #tpu.memory_space<vmem>>, vector<1x96xf32>
      %15 = vector.broadcast %14 : vector<1x96xf32> to vector<16x96xf32>
      %16 = arith.addf %13, %15 : vector<16x96xf32>
      %17 = arith.truncf %16 : vector<16x96xf32> to vector<16x96xbf16>
      %c0_14 = arith.constant 0 : index
      %c0_15 = arith.constant 0 : index
      %18 = vector.load %arg6[%c0_14, %c0_15] : memref<16x96xbf16, #tpu.memory_space<vmem>>, vector<16x96xbf16>
      tpu.vector_store %arg6[%c0_14, %c0_15], %17 {strides = array<i32>} : memref<16x96xbf16, #tpu.memory_space<vmem>>, vector<16x96xbf16>,
    } else {
    }
    return
  }
  func.func @transform_0(%arg0: i32, %arg1: i32, %arg2: i32) -> (i32, i32) {
    %c0_i32 = arith.constant 0 : i32
    return %arg0, %arg2 : i32, i32
  }
  func.func @transform_1(%arg0: i32, %arg1: i32, %arg2: i32) -> (i32, i32) {
    %c0_i32 = arith.constant 0 : i32
    return %arg2, %arg1 : i32, i32
  }
  func.func @transform_2(%arg0: i32, %arg1: i32, %arg2: i32) -> (i32, i32) {
    %c0_i32 = arith.constant 0 : i32
    %c0_i32_0 = arith.constant 0 : i32
    return %c0_i32, %arg1 : i32, i32
  }
  func.func @transform_3(%arg0: i32, %arg1: i32, %arg2: i32) -> (i32, i32) {
    %c0_i32 = arith.constant 0 : i32
    return %arg0, %arg1 : i32, i32
  }
}

</mosaic_0001>

<llo_original>
// kernel: tpu_custom_call.1
$region0: #{tpu_custom_call.1}
  #allocation0 [shape = 'u32[]', space=smem, size = 0x4, offset = 0x4, fixed_abs, tag = 'smem constant byte address 0x4 - core index']
  #allocation1 [shape = 'u32[144,128]{1,0:T(1,128)}', space=vmem, size = 0x12000, scoped, tag = 'internal scratch']
  #allocation2 [shape = 'f32[16,96]{1,0:T(8,128)}', space=vmem, size = 0x2000, scoped, tag = 'scratch operand']
  %s0 = inlined_call_operand.hbm [shape: f32[16,32], index: 0, kind: input, shape index: {}]
  %s1 = inlined_call_operand.hbm [shape: bf16[32,96], index: 1, kind: input, shape index: {}]
  %s2 = inlined_call_operand.vmem [shape: f32[1,96], index: 2, kind: input, shape index: {}]
  %s3 = inlined_call_operand.hbm [shape: bf16[16,96], index: 3, kind: output, shape index: {}]
  %s4 = sld [smem:[#allocation0]]
  $region38: #{tpu_custom_call.1} parent=0
    _
  %s6 = ssub.s32 1, %s4
  %s7 = scalar_select 0, %s6, %s4
  $region1: #{tpu_custom_call.1} parent=0
    #allocation3 [shape = 'u8[8192]{0}', space=vmem, size = 0x2000, scoped, tag = 'input window, operand 0, single buffered']
    #allocation4 [shape = 's32[1]{0}', space=sflag, size = 0x4, scoped, tag = 'scoped memory for tpu_custom_call.1']
    #allocation5 [shape = 's32[1]{0}', space=sflag, size = 0x4, scoped, tag = 'scoped memory for tpu_custom_call.1']
    #allocation6 [shape = 'u8[8192]{0}', space=vmem, size = 0x2000, scoped, tag = 'input window, operand 1, single buffered']
    #allocation7 [shape = 's32[1]{0}', space=sflag, size = 0x4, scoped, tag = 'scoped memory for tpu_custom_call.1']
    #allocation8 [shape = 'u8[4096]{0}', space=vmem, size = 0x1000, scoped, tag = 'output window, operand 0, single buffered']
    %8 = vsyncpa [#allocation4], 0
    %9 = vsyncpa [#allocation7], 0
    %10 = vsyncpa [#allocation5], 0
    // Predicated region
    $region2: #{tpu_custom_call.1} parent=1 // pred_check
      _
    $region3: #{tpu_custom_call.1} parent=1 // pred_check_branch
      %12 = sbr.rel (0) target = $region5
    $region4: #{tpu_custom_call.1} parent=1 // pred_region
      %s14 = ssub.s32 256, 256
      %15 = vsyncadd [#allocation4], %s14
      %s16 = sshll.u32 [#allocation3], 4
      %s17 = int_to_ptr.vmem [resolvable:$true] %s16
      %22 = dma.hbm_to_vmem [thread:$0]  %s0, 256, %s17, [#allocation4], 128, 128, 8
    $region5: #{tpu_custom_call.1} parent=1 // pred_fallthru
      _
    // Predicated region
    $region6: #{tpu_custom_call.1} parent=1 // pred_check
      _
    $region7: #{tpu_custom_call.1} parent=1 // pred_check_branch
      %24 = sbr.rel (0) target = $region9
    $region8: #{tpu_custom_call.1} parent=1 // pred_region
      %s26 = ssub.s32 256, 256
      %27 = vsyncadd [#allocation7], %s26
      %s28 = sshll.u32 [#allocation6], 4
      %s29 = int_to_ptr.vmem [resolvable:$true] %s28
      %34 = dma.hbm_to_vmem [thread:$0]  %s1, 256, %s29, [#allocation7], 64, 64, 4
    $region9: #{tpu_custom_call.1} parent=1 // pred_fallthru
      _
    // Predicated region
    $region10: #{tpu_custom_call.1} parent=1 // pred_check
      _
    $region11: #{tpu_custom_call.1} parent=1 // pred_check_branch
      %36 = sbr.rel (0) target = $region13
    $region12: #{tpu_custom_call.1} parent=1 // pred_region
      _
    $region13: #{tpu_custom_call.1} parent=1 // pred_fallthru
      _
    // Predicated region
    $region14: #{tpu_custom_call.1} parent=1 // pred_check
      _
    $region15: #{tpu_custom_call.1} parent=1 // pred_check_branch
      %38 = sbr.rel (0) target = $region17
    $region16: #{tpu_custom_call.1} parent=1 // pred_region
      %39 = dma.done [#allocation4], 256
    $region17: #{tpu_custom_call.1} parent=1 // pred_fallthru
      _
    // Predicated region
    $region18: #{tpu_custom_call.1} parent=1 // pred_check
      _
    $region19: #{tpu_custom_call.1} parent=1 // pred_check_branch
      %41 = sbr.rel (0) target = $region21
    $region20: #{tpu_custom_call.1} parent=1 // pred_region
      %42 = dma.done [#allocation7], 256
    $region21: #{tpu_custom_call.1} parent=1 // pred_fallthru
      _
    %p44 = scmp.eq.s32.totalorder 0, 0
    // Predicated region
    $region22: #{tpu_custom_call.1} parent=1 // pred_check
      %p45 = pneg %p44
    $region23: #{tpu_custom_call.1} parent=1 // pred_check_branch
      %47 = sbr.rel (%p45) target = $region25
    $region24: #{tpu_custom_call.1} parent=1 // pred_region
      %vm48 = vcmask 785408
      %49 = vst.msk [vmem:[#allocation2] sm:$0xff] %vm48, 0.0
      %50 = vst.msk [vmem:[#allocation2 + $0x8] sm:$0xff] %vm48, 0.0
    $region25: #{tpu_custom_call.1} parent=1 // pred_fallthru
      _
    %v51 = vld [vmem:[#allocation2] sm:$0xff]
    %v52 = vld [vmem:[#allocation2 + $0x8] sm:$0xff]
    %v53 = vld [vmem:[#allocation3] sm:$0xff]
    %v54 = vld [vmem:[#allocation3 + $0x8] sm:$0xff]
    %v55 = vpack.c.bf16 %v54, %v53
    %v56 = vld [vmem:[#allocation6] sm:$0xf]
    %v57 = vld [vmem:[#allocation6 + $0x4] sm:$0xf]
    %v58 = vld [vmem:[#allocation6 + $0x8] sm:$0xf]
    %v59 = vld [vmem:[#allocation6 + $0xc] sm:$0xf]
    %v64 = vunpack.c.l.b16 %v56
    %v65 = vunpack.c.l.b16 %v57
    %v66 = vunpack.c.l.b16 %v58
    %v67 = vunpack.c.l.b16 %v59
    %v68 = vpack.c.b16 %v65, %v64
    %v69 = vpack.c.b16 %v67, %v66
    %vm72 = vcmask 261120
    %v74 = vsel %vm72, %v55, 0
    %76 = vmatprep.subr.bf16.mxu0 0
    %77 = vmatpush1.bf16.msra.mxu0 %v68
    %78 = vmatprep.subr.bf16.mxu0 0
    %79 = vmatpush1.bf16.msra.mxu0 %v69
    %80 = vmatprep.subr.bf16.mxu0 0
    %81 = vmatpush1.bf16.msra.mxu0 0
    %82 = vmatprep.subr.bf16.mxu0 0
    %83 = vmatpush1.bf16.msra.mxu0 0
    %84 = vmatprep.subr.bf16.mxu0 0
    %85 = vmatpush1.bf16.msra.mxu0 0
    %86 = vmatprep.subr.bf16.mxu0 0
    %87 = vmatpush1.bf16.msra.mxu0 0
    %88 = vmatprep.subr.bf16.mxu0 0
    %89 = vmatpush1.bf16.msra.mxu0 0
    %90 = vmatprep.subr.bf16.mxu0 0
    %91 = vmatpush1.bf16.msra.mxu0 0
    %92 = vmatprep.subr.bf16.mxu0 0
    %93 = vmatpush1.bf16.msra.mxu0 0
    %94 = vmatprep.subr.bf16.mxu0 0
    %95 = vmatpush1.bf16.msra.mxu0 0
    %96 = vmatprep.subr.bf16.mxu0 0
    %97 = vmatpush1.bf16.msra.mxu0 0
    %98 = vmatprep.subr.bf16.mxu0 0
    %99 = vmatpush1.bf16.msra.mxu0 0
    %100 = vmatprep.subr.bf16.mxu0 0
    %101 = vmatpush1.bf16.msra.mxu0 0
    %102 = vmatprep.subr.bf16.mxu0 0
    %103 = vmatpush1.bf16.msra.mxu0 0
    %104 = vmatprep.subr.bf16.mxu0 0
    %105 = vmatpush1.bf16.msra.mxu0 0
    %106 = vmatprep.subr.bf16.mxu0 0
    %107 = vmatpush1.bf16.msra.mxu0 0
    %108 = vmatprep.mubr.bf16.mxu0 0
    %109 = vmatmul.mubr.bf16.gmra.mrb[0].mxu0 %v74
    %v110 = vpop.f32.mrb[0].mxu0
    %v111 = vadd.f32 0.0, %v110
    %v112 = vpop.f32.mrb[0].mxu0
    %v113 = vpop.f32.mrb[0].mxu0
    %v114 = vadd.f32 0.0, %v113
    %v115 = vpop.f32.mrb[0].mxu0
    %116 = vdwg.mxu0
    %v117 = vadd.f32 %v51, %v111
    %v118 = vadd.f32 %v52, %v114
    %vm119 = vcmask 785408
    %120 = vst.msk [vmem:[#allocation2] sm:$0xff] %vm119, %v117
    %121 = vst.msk [vmem:[#allocation2 + $0x8] sm:$0xff] %vm119, %v118
    // Predicated region
    $region26: #{tpu_custom_call.1} parent=1 // pred_check
      %p122 = pneg %p44
    $region27: #{tpu_custom_call.1} parent=1 // pred_check_branch
      %124 = sbr.rel (%p122) target = $region29
    $region28: #{tpu_custom_call.1} parent=1 // pred_region
      %v125 = vld [vmem:[#allocation2] sm:$0xff]
      %v126 = vld [vmem:[#allocation2 + $0x8] sm:$0xff]
      %v127 = vld [vmem:[%s2] sm:$0x1]
      %v129 = vlaneseq
      %v130 = vshrl.u32 %v129, 7
      %v131 = vsub.s32 0, %v130
      %v132 = vrot.slane %v127, %v131
      %v134 = vadd.f32 %v125, %v132
      %v135 = vadd.f32 %v126, %v132
      %v136 = vpack.c.bf16 %v135, %v134
      %v138 = vunpack.c.l.b16 %v136
      %v139 = vunpack.c.h.b16 %v136
      %v140 = vpack.c.b16 %v138, %v138
      %v141 = vpack.c.b16 %v139, %v139
      %vm144 = vcmask 781312
      %145 = vst.msk [vmem:[#allocation8] sm:$0xf] %vm144, %v140
      %146 = vst.msk [vmem:[#allocation8 + $0x4] sm:$0xf] %vm144, %v141
    $region29: #{tpu_custom_call.1} parent=1 // pred_fallthru
      _
    // Predicated region
    $region30: #{tpu_custom_call.1} parent=1 // pred_check
      _
    $region31: #{tpu_custom_call.1} parent=1 // pred_check_branch
      %148 = sbr.rel (0) target = $region33
    $region32: #{tpu_custom_call.1} parent=1 // pred_region
      %s150 = ssub.s32 128, 128
      %151 = vsyncadd [#allocation5], %s150
      %s152 = sshll.u32 [#allocation8], 4
      %s153 = int_to_ptr.vmem [resolvable:$true] %s152
      %158 = dma.vmem_to_hbm [thread:$0]  %s153, 128, %s3, [#allocation5], 64, 64, 4
    $region33: #{tpu_custom_call.1} parent=1 // pred_fallthru
      _
    // Predicated region
    $region34: #{tpu_custom_call.1} parent=1 // pred_check
      _
    $region35: #{tpu_custom_call.1} parent=1 // pred_check_branch
      %160 = sbr.rel (0) target = $region37
    $region36: #{tpu_custom_call.1} parent=1 // pred_region
      %161 = dma.done [#allocation5], 128
    $region37: #{tpu_custom_call.1} parent=1 // pred_fallthru
      _
    %162 = vsyncpa [#allocation4], 1
    %163 = vsyncpa [#allocation7], 1
    %164 = vsyncpa [#allocation5], 1

</llo_original>
